<compile_context>
chip_gen: v7x
topology: tpu7x:2x2x1
jax: 0.10.0
libtpu: 0.0.40
codegen_flags: <defaults>
</compile_context>

<pallas_src>
import jax
import jax.numpy as jnp
import numpy as np
from jax.experimental import pallas as pl
from jax.experimental.pallas import tpu as pltpu

NUM_HIDDEN_NODES = 32
NUM_CLASSES = 8          # embedding table has NUM_CLASSES + 1 rows
BATCH_SIZE = 2
NUM_LABELS = 8           # sequence length (num_labels)


def prediction_forward(target, w_sy, w_yy, b_yy, emb_table, w_ss):
    """Pallas-backed forward pass. target: (B, T) int32 -> (B, T, H) float32."""
    B, T = target.shape
    H = w_sy.shape[0]
    NC1 = emb_table.shape[0]          # NUM_CLASSES + 1

    # (B, T) -> (B*T, 1) row-major flatten: metadata-only, rows are b*T + t.
    tgt_col = target.reshape(B * T, 1).astype(jnp.int32)
    b_yy2 = b_yy.reshape(1, H).astype(jnp.float32)

    def kernel(tgt_ref,    # VMEM (B*T, 1) int32, b-major rows
               emb_ref,    # VMEM (NC1, 4H) f32
               w_ss_ref,   # VMEM (H, 4H) f32
               w_sy_ref,   # VMEM (H, H)  f32
               w_yy_ref,   # VMEM (H, H)  f32
               b_yy_ref,   # VMEM (1, H)  f32
               out_ref):   # VMEM (B*T, H) f32, b-major rows
        # ---- hoisted embedding lookup: one-hot @ table on the MXU (off the
        # serial chain, computed once for all B*T (b, t) pairs) -------------
        cls_id = jax.lax.broadcasted_iota(jnp.int32, (B * T, NC1), 1)
        onehot = (cls_id == tgt_ref[...]).astype(jnp.float32)       # (B*T, NC1)
        emb_all = jnp.dot(onehot, emb_ref[...],
                          preferred_element_type=jnp.float32)       # (B*T, 4H)

        w_ss = w_ss_ref[...]                 # loop-invariant; load once

        s = jnp.zeros((B, H), jnp.float32)   # hidden state
        c = jnp.zeros((B, H), jnp.float32)   # cell state
        s_hist = []                          # register-resident state history

        # ---- serial recurrence only (no loads/stores on the chain) --------
        # Static Python loop == fully unrolled; all slices below are static.
        for t in range(T):
            s_hist.append(s)                 # record s_{t-1} for the projection

            # Gate bias for step t: static sublane slices of emb_all (off-chain).
            emb_t = jnp.concatenate(
                [emb_all[b * T + t:b * T + t + 1, :] for b in range(B)], axis=0)

            # rec_input = Embedding(target[:, t]) + L_ss(s_{t-1})   (f32 MXU)
            gates = emb_t + jnp.dot(s, w_ss, preferred_element_type=jnp.float32)

            # Packed nonlinearities: one full-width (B, 4H) sigmoid pass, tanh
            # only on the cell gate and the cell state.
            # _lstmcell chunk order: ingate, forgetgate, cellgate, outgate.
            sig = jax.nn.sigmoid(gates)
            i_s = sig[:, 0 * H:1 * H]
            f_s = sig[:, 1 * H:2 * H]
            o_s = sig[:, 3 * H:4 * H]
            g_t = jnp.tanh(gates[:, 2 * H:3 * H])
            c = f_s * c + i_s * g_t
            s = o_s * jnp.tanh(c)

        # ---- batched output projection: y = L_yy(tanh(L_sy(S))) ------------
        # Rows assembled in b-major order (b*T + t) so the wrapper reshape to
        # (B, T, H) is free.
        S = jnp.concatenate(
            [s_hist[t][b:b + 1, :] for b in range(B) for t in range(T)], axis=0)
        h = jnp.tanh(jnp.dot(S, w_sy_ref[...],
                             preferred_element_type=jnp.float32))
        y = jnp.dot(h, w_yy_ref[...],
                    preferred_element_type=jnp.float32) + b_yy_ref[...]
        out_ref[...] = y                     # single (B*T, H) store

    out_flat = pl.pallas_call(
        kernel,
        out_shape=jax.ShapeDtypeStruct((B * T, H), jnp.float32),
        grid_spec=pltpu.PrefetchScalarGridSpec(
            num_scalar_prefetch=0,
            grid=(1,),                              # whole recurrence in one step
            in_specs=[
                pl.BlockSpec((B * T, 1), lambda i: (0, 0)),     # target column
                pl.BlockSpec((NC1, 4 * H), lambda i: (0, 0)),   # embedding table
                pl.BlockSpec((H, 4 * H), lambda i: (0, 0)),     # W_ss
                pl.BlockSpec((H, H), lambda i: (0, 0)),         # W_sy
                pl.BlockSpec((H, H), lambda i: (0, 0)),         # W_yy
                pl.BlockSpec((1, H), lambda i: (0, 0)),         # b_yy
            ],
            out_specs=pl.BlockSpec((B * T, H), lambda i: (0, 0)),
        ),
        compiler_params=pltpu.CompilerParams(
            dimension_semantics=("arbitrary",)),    # strictly sequential
    )(tgt_col, emb_table.astype(jnp.float32), w_ss.astype(jnp.float32),
      w_sy.astype(jnp.float32), w_yy.astype(jnp.float32), b_yy2)

    # Row order is b*T + t, so this reshape is a free metadata-only op.
    return out_flat.reshape(B, T, H)


def prediction_ref(target, w_sy, w_yy, b_yy, emb_table, w_ss):
    """Pure-JAX (f32) reference mirroring the PyTorch loop."""
    B, T = target.shape
    H = w_sy.shape[0]
    s = jnp.zeros((B, H), jnp.float32)
    c = jnp.zeros((B, H), jnp.float32)
    outs = []
    for step in range(T):
        y = jnp.tanh(s @ w_sy) @ w_yy + b_yy
        gates = emb_table[target[:, step]] + s @ w_ss
        i, f, g, o = jnp.split(gates, 4, axis=1)
        c = jax.nn.sigmoid(f) * c + jax.nn.sigmoid(i) * jnp.tanh(g)
        s = jax.nn.sigmoid(o) * jnp.tanh(c)
        outs.append(y)
    return jnp.stack(outs, axis=1)


if __name__ == "__main__":
    H = NUM_HIDDEN_NODES
    key = jax.random.PRNGKey(0)
    k1, k2, k3, k4, k5, k6 = jax.random.split(key, 6)

    # Deterministic synthetic parameters (stored as (in, out) for x @ W).
    w_sy = jax.random.normal(k1, (H, H), jnp.float32) * 0.1        # L_sy (no bias)
    w_yy = jax.random.normal(k2, (H, H), jnp.float32) * 0.1        # L_yy weight
    b_yy = jax.random.normal(k3, (H,), jnp.float32) * 0.1          # L_yy bias
    emb_table = jax.random.normal(k4, (NUM_CLASSES + 1, 4 * H), jnp.float32) * 0.1  # L_ys
    w_ss = jax.random.normal(k5, (H, 4 * H), jnp.float32) * 0.1    # L_ss (no bias)

    target = jax.random.randint(k6, (BATCH_SIZE, NUM_LABELS), 0, NUM_CLASSES + 1,
                                dtype=jnp.int32)

    out = prediction_forward(target, w_sy, w_yy, b_yy, emb_table, w_ss)
    out = jax.block_until_ready(out)

    ref = prediction_ref(target, w_sy, w_yy, b_yy, emb_table, w_ss)
    # f32 everywhere now -> tight tolerance (only MXU f32 multi-pass rounding).
    np.testing.assert_allclose(np.asarray(out), np.asarray(ref),
                               rtol=1e-4, atol=1e-4)
    assert out.shape == (BATCH_SIZE, NUM_LABELS, NUM_HIDDEN_NODES)

    print("KERNEL_OK")
</pallas_src>

<mosaic_0001>
module attributes {stable_mosaic.version = 11 : i64} {
  func.func @kernel(%arg0: i32, %arg1: memref<16x1xi32, #tpu.memory_space<vmem>>, %arg2: memref<9x128xf32, #tpu.memory_space<vmem>>, %arg3: memref<32x128xf32, #tpu.memory_space<vmem>>, %arg4: memref<32x32xf32, #tpu.memory_space<vmem>>, %arg5: memref<32x32xf32, #tpu.memory_space<vmem>>, %arg6: memref<1x32xf32, #tpu.memory_space<vmem>>, %arg7: memref<16x32xf32, #tpu.memory_space<vmem>>) attributes {dimension_semantics = [#tpu.dimension_semantics<arbitrary>], iteration_bounds = array<i64: 1>, scalar_prefetch = 0 : i64, scratch_operands = 0 : i64, tpu.core_type = #tpu.core_type<tc>, window_params = [{pipeline_mode = #tpu.pipeline_mode<synchronous>, transform_indices = @transform_0, window_bounds = array<i64: 16, 1>}, {pipeline_mode = #tpu.pipeline_mode<synchronous>, transform_indices = @transform_1, window_bounds = array<i64: 9, 128>}, {pipeline_mode = #tpu.pipeline_mode<synchronous>, transform_indices = @transform_2, window_bounds = array<i64: 32, 128>}, {pipeline_mode = #tpu.pipeline_mode<synchronous>, transform_indices = @transform_3, window_bounds = array<i64: 32, 32>}, {pipeline_mode = #tpu.pipeline_mode<synchronous>, transform_indices = @transform_4, window_bounds = array<i64: 32, 32>}, {pipeline_mode = #tpu.pipeline_mode<synchronous>, transform_indices = @transform_5, window_bounds = array<i64: 1, 32>}, {pipeline_mode = #tpu.pipeline_mode<synchronous>, transform_indices = @transform_6, window_bounds = array<i64: 16, 32>}]} {
    %0 = tpu.iota {dimensions = array<i32: 1>} : vector<16x9xi32>
    %c0 = arith.constant 0 : index
    %c0_0 = arith.constant 0 : index
    %1 = vector.load %arg1[%c0, %c0_0] : memref<16x1xi32, #tpu.memory_space<vmem>>, vector<16x1xi32>
    %2 = vector.broadcast %1 : vector<16x1xi32> to vector<16x9xi32>
    %3 = arith.cmpi eq, %0, %2 : vector<16x9xi32>
    %4 = arith.extui %3 : vector<16x9xi1> to vector<16x9xi32>
    %5 = arith.sitofp %4 : vector<16x9xi32> to vector<16x9xf32>
    %c0_1 = arith.constant 0 : index
    %c0_2 = arith.constant 0 : index
    %6 = vector.load %arg2[%c0_1, %c0_2] : memref<9x128xf32, #tpu.memory_space<vmem>>, vector<9x128xf32>
    %cst = arith.constant dense<0.000000e+00> : vector<16x128xf32>
    %7 = tpu.matmul %5, %6, %cst {dimension_numbers = #tpu.dot_dimension_numbers<[1], [0], [0], [1], [0, 0, 1, 1], [], []>} : vector<16x9xf32>, vector<9x128xf32>, vector<16x128xf32> -> vector<16x128xf32>
    %c0_3 = arith.constant 0 : index
    %c0_4 = arith.constant 0 : index
    %8 = vector.load %arg3[%c0_3, %c0_4] : memref<32x128xf32, #tpu.memory_space<vmem>>, vector<32x128xf32>
    %cst_5 = arith.constant 0.000000e+00 : f32
    %9 = vector.broadcast %cst_5 : f32 to vector<2x32xf32>
    %cst_6 = arith.constant 0.000000e+00 : f32
    %10 = vector.broadcast %cst_6 : f32 to vector<2x32xf32>
    %11 = vector.extract_strided_slice %7 {offsets = [0, 0], sizes = [1, 128], strides = [1, 1]} : vector<16x128xf32> to vector<1x128xf32>
    %12 = vector.extract_strided_slice %7 {offsets = [8, 0], sizes = [1, 128], strides = [1, 1]} : vector<16x128xf32> to vector<1x128xf32>
    %13 = tpu.concatenate %11, %12 in 0 : vector<1x128xf32>, vector<1x128xf32> -> vector<2x128xf32>
    %cst_7 = arith.constant dense<0.000000e+00> : vector<2x128xf32>
    %14 = tpu.matmul %9, %8, %cst_7 {dimension_numbers = #tpu.dot_dimension_numbers<[1], [0], [0], [1], [0, 0, 1, 1], [], []>} : vector<2x32xf32>, vector<32x128xf32>, vector<2x128xf32> -> vector<2x128xf32>
    %15 = arith.addf %13, %14 : vector<2x128xf32>
    %16 = arith.negf %15 : vector<2x128xf32>
    %17 = math.exp %16 : vector<2x128xf32>
    %cst_8 = arith.constant 1.000000e+00 : f32
    %18 = vector.broadcast %cst_8 : f32 to vector<2x128xf32>
    %19 = arith.addf %18, %17 : vector<2x128xf32>
    %20 = arith.divf %18, %19 : vector<2x128xf32>
    %21 = vector.extract_strided_slice %20 {offsets = [0, 0], sizes = [2, 32], strides = [1, 1]} : vector<2x128xf32> to vector<2x32xf32>
    %22 = vector.extract_strided_slice %20 {offsets = [0, 32], sizes = [2, 32], strides = [1, 1]} : vector<2x128xf32> to vector<2x32xf32>
    %23 = vector.extract_strided_slice %20 {offsets = [0, 96], sizes = [2, 32], strides = [1, 1]} : vector<2x128xf32> to vector<2x32xf32>
    %24 = vector.extract_strided_slice %15 {offsets = [0, 64], sizes = [2, 32], strides = [1, 1]} : vector<2x128xf32> to vector<2x32xf32>
    %25 = math.tanh %24 : vector<2x32xf32>
    %26 = arith.mulf %22, %10 : vector<2x32xf32>
    %27 = arith.mulf %21, %25 : vector<2x32xf32>
    %28 = arith.addf %26, %27 : vector<2x32xf32>
    %29 = math.tanh %28 : vector<2x32xf32>
    %30 = arith.mulf %23, %29 : vector<2x32xf32>
    %31 = vector.extract_strided_slice %7 {offsets = [1, 0], sizes = [1, 128], strides = [1, 1]} : vector<16x128xf32> to vector<1x128xf32>
    %32 = vector.extract_strided_slice %7 {offsets = [9, 0], sizes = [1, 128], strides = [1, 1]} : vector<16x128xf32> to vector<1x128xf32>
    %33 = tpu.concatenate %31, %32 in 0 : vector<1x128xf32>, vector<1x128xf32> -> vector<2x128xf32>
    %cst_9 = arith.constant dense<0.000000e+00> : vector<2x128xf32>
    %34 = tpu.matmul %30, %8, %cst_9 {dimension_numbers = #tpu.dot_dimension_numbers<[1], [0], [0], [1], [0, 0, 1, 1], [], []>} : vector<2x32xf32>, vector<32x128xf32>, vector<2x128xf32> -> vector<2x128xf32>
    %35 = arith.addf %33, %34 : vector<2x128xf32>
    %36 = arith.negf %35 : vector<2x128xf32>
    %37 = math.exp %36 : vector<2x128xf32>
    %cst_10 = arith.constant 1.000000e+00 : f32
    %38 = vector.broadcast %cst_10 : f32 to vector<2x128xf32>
    %39 = arith.addf %38, %37 : vector<2x128xf32>
    %40 = arith.divf %38, %39 : vector<2x128xf32>
    %41 = vector.extract_strided_slice %40 {offsets = [0, 0], sizes = [2, 32], strides = [1, 1]} : vector<2x128xf32> to vector<2x32xf32>
    %42 = vector.extract_strided_slice %40 {offsets = [0, 32], sizes = [2, 32], strides = [1, 1]} : vector<2x128xf32> to vector<2x32xf32>
    %43 = vector.extract_strided_slice %40 {offsets = [0, 96], sizes = [2, 32], strides = [1, 1]} : vector<2x128xf32> to vector<2x32xf32>
    %44 = vector.extract_strided_slice %35 {offsets = [0, 64], sizes = [2, 32], strides = [1, 1]} : vector<2x128xf32> to vector<2x32xf32>
    %45 = math.tanh %44 : vector<2x32xf32>
    %46 = arith.mulf %42, %28 : vector<2x32xf32>
    %47 = arith.mulf %41, %45 : vector<2x32xf32>
    %48 = arith.addf %46, %47 : vector<2x32xf32>
    %49 = math.tanh %48 : vector<2x32xf32>
    %50 = arith.mulf %43, %49 : vector<2x32xf32>
    %51 = vector.extract_strided_slice %7 {offsets = [2, 0], sizes = [1, 128], strides = [1, 1]} : vector<16x128xf32> to vector<1x128xf32>
    %52 = vector.extract_strided_slice %7 {offsets = [10, 0], sizes = [1, 128], strides = [1, 1]} : vector<16x128xf32> to vector<1x128xf32>
    %53 = tpu.concatenate %51, %52 in 0 : vector<1x128xf32>, vector<1x128xf32> -> vector<2x128xf32>
    %cst_11 = arith.constant dense<0.000000e+00> : vector<2x128xf32>
    %54 = tpu.matmul %50, %8, %cst_11 {dimension_numbers = #tpu.dot_dimension_numbers<[1], [0], [0], [1], [0, 0, 1, 1], [], []>} : vector<2x32xf32>, vector<32x128xf32>, vector<2x128xf32> -> vector<2x128xf32>
    %55 = arith.addf %53, %54 : vector<2x128xf32>
    %56 = arith.negf %55 : vector<2x128xf32>
    %57 = math.exp %56 : vector<2x128xf32>
    %cst_12 = arith.constant 1.000000e+00 : f32
    %58 = vector.broadcast %cst_12 : f32 to vector<2x128xf32>
    %59 = arith.addf %58, %57 : vector<2x128xf32>
    %60 = arith.divf %58, %59 : vector<2x128xf32>
    %61 = vector.extract_strided_slice %60 {offsets = [0, 0], sizes = [2, 32], strides = [1, 1]} : vector<2x128xf32> to vector<2x32xf32>
    %62 = vector.extract_strided_slice %60 {offsets = [0, 32], sizes = [2, 32], strides = [1, 1]} : vector<2x128xf32> to vector<2x32xf32>
    %63 = vector.extract_strided_slice %60 {offsets = [0, 96], sizes = [2, 32], strides = [1, 1]} : vector<2x128xf32> to vector<2x32xf32>
    %64 = vector.extract_strided_slice %55 {offsets = [0, 64], sizes = [2, 32], strides = [1, 1]} : vector<2x128xf32> to vector<2x32xf32>
    %65 = math.tanh %64 : vector<2x32xf32>
    %66 = arith.mulf %62, %48 : vector<2x32xf32>
    %67 = arith.mulf %61, %65 : vector<2x32xf32>
    %68 = arith.addf %66, %67 : vector<2x32xf32>
    %69 = math.tanh %68 : vector<2x32xf32>
    %70 = arith.mulf %63, %69 : vector<2x32xf32>
    %71 = vector.extract_strided_slice %7 {offsets = [3, 0], sizes = [1, 128], strides = [1, 1]} : vector<16x128xf32> to vector<1x128xf32>
    %72 = vector.extract_strided_slice %7 {offsets = [11, 0], sizes = [1, 128], strides = [1, 1]} : vector<16x128xf32> to vector<1x128xf32>
    %73 = tpu.concatenate %71, %72 in 0 : vector<1x128xf32>, vector<1x128xf32> -> vector<2x128xf32>
    %cst_13 = arith.constant dense<0.000000e+00> : vector<2x128xf32>
    %74 = tpu.matmul %70, %8, %cst_13 {dimension_numbers = #tpu.dot_dimension_numbers<[1], [0], [0], [1], [0, 0, 1, 1], [], []>} : vector<2x32xf32>, vector<32x128xf32>, vector<2x128xf32> -> vector<2x128xf32>
    %75 = arith.addf %73, %74 : vector<2x128xf32>
    %76 = arith.negf %75 : vector<2x128xf32>
    %77 = math.exp %76 : vector<2x128xf32>
    %cst_14 = arith.constant 1.000000e+00 : f32
    %78 = vector.broadcast %cst_14 : f32 to vector<2x128xf32>
    %79 = arith.addf %78, %77 : vector<2x128xf32>
    %80 = arith.divf %78, %79 : vector<2x128xf32>
    %81 = vector.extract_strided_slice %80 {offsets = [0, 0], sizes = [2, 32], strides = [1, 1]} : vector<2x128xf32> to vector<2x32xf32>
    %82 = vector.extract_strided_slice %80 {offsets = [0, 32], sizes = [2, 32], strides = [1, 1]} : vector<2x128xf32> to vector<2x32xf32>
    %83 = vector.extract_strided_slice %80 {offsets = [0, 96], sizes = [2, 32], strides = [1, 1]} : vector<2x128xf32> to vector<2x32xf32>
    %84 = vector.extract_strided_slice %75 {offsets = [0, 64], sizes = [2, 32], strides = [1, 1]} : vector<2x128xf32> to vector<2x32xf32>
    %85 = math.tanh %84 : vector<2x32xf32>
    %86 = arith.mulf %82, %68 : vector<2x32xf32>
    %87 = arith.mulf %81, %85 : vector<2x32xf32>
    %88 = arith.addf %86, %87 : vector<2x32xf32>
    %89 = math.tanh %88 : vector<2x32xf32>
    %90 = arith.mulf %83, %89 : vector<2x32xf32>
    %91 = vector.extract_strided_slice %7 {offsets = [4, 0], sizes = [1, 128], strides = [1, 1]} : vector<16x128xf32> to vector<1x128xf32>
    %92 = vector.extract_strided_slice %7 {offsets = [12, 0], sizes = [1, 128], strides = [1, 1]} : vector<16x128xf32> to vector<1x128xf32>
    %93 = tpu.concatenate %91, %92 in 0 : vector<1x128xf32>, vector<1x128xf32> -> vector<2x128xf32>
    %cst_15 = arith.constant dense<0.000000e+00> : vector<2x128xf32>
    %94 = tpu.matmul %90, %8, %cst_15 {dimension_numbers = #tpu.dot_dimension_numbers<[1], [0], [0], [1], [0, 0, 1, 1], [], []>} : vector<2x32xf32>, vector<32x128xf32>, vector<2x128xf32> -> vector<2x128xf32>
    %95 = arith.addf %93, %94 : vector<2x128xf32>
    %96 = arith.negf %95 : vector<2x128xf32>
    %97 = math.exp %96 : vector<2x128xf32>
    %cst_16 = arith.constant 1.000000e+00 : f32
    %98 = vector.broadcast %cst_16 : f32 to vector<2x128xf32>
    %99 = arith.addf %98, %97 : vector<2x128xf32>
    %100 = arith.divf %98, %99 : vector<2x128xf32>
    %101 = vector.extract_strided_slice %100 {offsets = [0, 0], sizes = [2, 32], strides = [1, 1]} : vector<2x128xf32> to vector<2x32xf32>
    %102 = vector.extract_strided_slice %100 {offsets = [0, 32], sizes = [2, 32], strides = [1, 1]} : vector<2x128xf32> to vector<2x32xf32>
    %103 = vector.extract_strided_slice %100 {offsets = [0, 96], sizes = [2, 32], strides = [1, 1]} : vector<2x128xf32> to vector<2x32xf32>
    %104 = vector.extract_strided_slice %95 {offsets = [0, 64], sizes = [2, 32], strides = [1, 1]} : vector<2x128xf32> to vector<2x32xf32>
    %105 = math.tanh %104 : vector<2x32xf32>
    %106 = arith.mulf %102, %88 : vector<2x32xf32>
    %107 = arith.mulf %101, %105 : vector<2x32xf32>
    %108 = arith.addf %106, %107 : vector<2x32xf32>
    %109 = math.tanh %108 : vector<2x32xf32>
    %110 = arith.mulf %103, %109 : vector<2x32xf32>
    %111 = vector.extract_strided_slice %7 {offsets = [5, 0], sizes = [1, 128], strides = [1, 1]} : vector<16x128xf32> to vector<1x128xf32>
    %112 = vector.extract_strided_slice %7 {offsets = [13, 0], sizes = [1, 128], strides = [1, 1]} : vector<16x128xf32> to vector<1x128xf32>
    %113 = tpu.concatenate %111, %112 in 0 : vector<1x128xf32>, vector<1x128xf32> -> vector<2x128xf32>
    %cst_17 = arith.constant dense<0.000000e+00> : vector<2x128xf32>
    %114 = tpu.matmul %110, %8, %cst_17 {dimension_numbers = #tpu.dot_dimension_numbers<[1], [0], [0], [1], [0, 0, 1, 1], [], []>} : vector<2x32xf32>, vector<32x128xf32>, vector<2x128xf32> -> vector<2x128xf32>
    %115 = arith.addf %113, %114 : vector<2x128xf32>
    %116 = arith.negf %115 : vector<2x128xf32>
    %117 = math.exp %116 : vector<2x128xf32>
    %cst_18 = arith.constant 1.000000e+00 : f32
    %118 = vector.broadcast %cst_18 : f32 to vector<2x128xf32>
    %119 = arith.addf %118, %117 : vector<2x128xf32>
    %120 = arith.divf %118, %119 : vector<2x128xf32>
    %121 = vector.extract_strided_slice %120 {offsets = [0, 0], sizes = [2, 32], strides = [1, 1]} : vector<2x128xf32> to vector<2x32xf32>
    %122 = vector.extract_strided_slice %120 {offsets = [0, 32], sizes = [2, 32], strides = [1, 1]} : vector<2x128xf32> to vector<2x32xf32>
    %123 = vector.extract_strided_slice %120 {offsets = [0, 96], sizes = [2, 32], strides = [1, 1]} : vector<2x128xf32> to vector<2x32xf32>
    %124 = vector.extract_strided_slice %115 {offsets = [0, 64], sizes = [2, 32], strides = [1, 1]} : vector<2x128xf32> to vector<2x32xf32>
    %125 = math.tanh %124 : vector<2x32xf32>
    %126 = arith.mulf %122, %108 : vector<2x32xf32>
    %127 = arith.mulf %121, %125 : vector<2x32xf32>
    %128 = arith.addf %126, %127 : vector<2x32xf32>
    %129 = math.tanh %128 : vector<2x32xf32>
    %130 = arith.mulf %123, %129 : vector<2x32xf32>
    %131 = vector.extract_strided_slice %7 {offsets = [6, 0], sizes = [1, 128], strides = [1, 1]} : vector<16x128xf32> to vector<1x128xf32>
    %132 = vector.extract_strided_slice %7 {offsets = [14, 0], sizes = [1, 128], strides = [1, 1]} : vector<16x128xf32> to vector<1x128xf32>
    %133 = tpu.concatenate %131, %132 in 0 : vector<1x128xf32>, vector<1x128xf32> -> vector<2x128xf32>
    %cst_19 = arith.constant dense<0.000000e+00> : vector<2x128xf32>
    %134 = tpu.matmul %130, %8, %cst_19 {dimension_numbers = #tpu.dot_dimension_numbers<[1], [0], [0], [1], [0, 0, 1, 1], [], []>} : vector<2x32xf32>, vector<32x128xf32>, vector<2x128xf32> -> vector<2x128xf32>
    %135 = arith.addf %133, %134 : vector<2x128xf32>
    %136 = arith.negf %135 : vector<2x128xf32>
    %137 = math.exp %136 : vector<2x128xf32>
    %cst_20 = arith.constant 1.000000e+00 : f32
    %138 = vector.broadcast %cst_20 : f32 to vector<2x128xf32>
    %139 = arith.addf %138, %137 : vector<2x128xf32>
    %140 = arith.divf %138, %139 : vector<2x128xf32>
    %141 = vector.extract_strided_slice %140 {offsets = [0, 0], sizes = [2, 32], strides = [1, 1]} : vector<2x128xf32> to vector<2x32xf32>
    %142 = vector.extract_strided_slice %140 {offsets = [0, 32], sizes = [2, 32], strides = [1, 1]} : vector<2x128xf32> to vector<2x32xf32>
    %143 = vector.extract_strided_slice %140 {offsets = [0, 96], sizes = [2, 32], strides = [1, 1]} : vector<2x128xf32> to vector<2x32xf32>
    %144 = vector.extract_strided_slice %135 {offsets = [0, 64], sizes = [2, 32], strides = [1, 1]} : vector<2x128xf32> to vector<2x32xf32>
    %145 = math.tanh %144 : vector<2x32xf32>
    %146 = arith.mulf %142, %128 : vector<2x32xf32>
    %147 = arith.mulf %141, %145 : vector<2x32xf32>
    %148 = arith.addf %146, %147 : vector<2x32xf32>
    %149 = math.tanh %148 : vector<2x32xf32>
    %150 = arith.mulf %143, %149 : vector<2x32xf32>
    %151 = vector.extract_strided_slice %9 {offsets = [0, 0], sizes = [1, 32], strides = [1, 1]} : vector<2x32xf32> to vector<1x32xf32>
    %152 = vector.extract_strided_slice %30 {offsets = [0, 0], sizes = [1, 32], strides = [1, 1]} : vector<2x32xf32> to vector<1x32xf32>
    %153 = vector.extract_strided_slice %50 {offsets = [0, 0], sizes = [1, 32], strides = [1, 1]} : vector<2x32xf32> to vector<1x32xf32>
    %154 = vector.extract_strided_slice %70 {offsets = [0, 0], sizes = [1, 32], strides = [1, 1]} : vector<2x32xf32> to vector<1x32xf32>
    %155 = vector.extract_strided_slice %90 {offsets = [0, 0], sizes = [1, 32], strides = [1, 1]} : vector<2x32xf32> to vector<1x32xf32>
    %156 = vector.extract_strided_slice %110 {offsets = [0, 0], sizes = [1, 32], strides = [1, 1]} : vector<2x32xf32> to vector<1x32xf32>
    %157 = vector.extract_strided_slice %130 {offsets = [0, 0], sizes = [1, 32], strides = [1, 1]} : vector<2x32xf32> to vector<1x32xf32>
    %158 = vector.extract_strided_slice %150 {offsets = [0, 0], sizes = [1, 32], strides = [1, 1]} : vector<2x32xf32> to vector<1x32xf32>
    %159 = vector.extract_strided_slice %9 {offsets = [1, 0], sizes = [1, 32], strides = [1, 1]} : vector<2x32xf32> to vector<1x32xf32>
    %160 = vector.extract_strided_slice %30 {offsets = [1, 0], sizes = [1, 32], strides = [1, 1]} : vector<2x32xf32> to vector<1x32xf32>
    %161 = vector.extract_strided_slice %50 {offsets = [1, 0], sizes = [1, 32], strides = [1, 1]} : vector<2x32xf32> to vector<1x32xf32>
    %162 = vector.extract_strided_slice %70 {offsets = [1, 0], sizes = [1, 32], strides = [1, 1]} : vector<2x32xf32> to vector<1x32xf32>
    %163 = vector.extract_strided_slice %90 {offsets = [1, 0], sizes = [1, 32], strides = [1, 1]} : vector<2x32xf32> to vector<1x32xf32>
    %164 = vector.extract_strided_slice %110 {offsets = [1, 0], sizes = [1, 32], strides = [1, 1]} : vector<2x32xf32> to vector<1x32xf32>
    %165 = vector.extract_strided_slice %130 {offsets = [1, 0], sizes = [1, 32], strides = [1, 1]} : vector<2x32xf32> to vector<1x32xf32>
    %166 = vector.extract_strided_slice %150 {offsets = [1, 0], sizes = [1, 32], strides = [1, 1]} : vector<2x32xf32> to vector<1x32xf32>
    %167 = tpu.concatenate %151, %152, %153, %154, %155, %156, %157, %158, %159, %160, %161, %162, %163, %164, %165, %166 in 0 : vector<1x32xf32>, vector<1x32xf32>, vector<1x32xf32>, vector<1x32xf32>, vector<1x32xf32>, vector<1x32xf32>, vector<1x32xf32>, vector<1x32xf32>, vector<1x32xf32>, vector<1x32xf32>, vector<1x32xf32>, vector<1x32xf32>, vector<1x32xf32>, vector<1x32xf32>, vector<1x32xf32>, vector<1x32xf32> -> vector<16x32xf32>
    %c0_21 = arith.constant 0 : index
    %c0_22 = arith.constant 0 : index
    %168 = vector.load %arg4[%c0_21, %c0_22] : memref<32x32xf32, #tpu.memory_space<vmem>>, vector<32x32xf32>
    %cst_23 = arith.constant dense<0.000000e+00> : vector<16x32xf32>
    %169 = tpu.matmul %167, %168, %cst_23 {dimension_numbers = #tpu.dot_dimension_numbers<[1], [0], [0], [1], [0, 0, 1, 1], [], []>} : vector<16x32xf32>, vector<32x32xf32>, vector<16x32xf32> -> vector<16x32xf32>
    %170 = math.tanh %169 : vector<16x32xf32>
    %c0_24 = arith.constant 0 : index
    %c0_25 = arith.constant 0 : index
    %171 = vector.load %arg5[%c0_24, %c0_25] : memref<32x32xf32, #tpu.memory_space<vmem>>, vector<32x32xf32>
    %cst_26 = arith.constant dense<0.000000e+00> : vector<16x32xf32>
    %172 = tpu.matmul %170, %171, %cst_26 {dimension_numbers = #tpu.dot_dimension_numbers<[1], [0], [0], [1], [0, 0, 1, 1], [], []>} : vector<16x32xf32>, vector<32x32xf32>, vector<16x32xf32> -> vector<16x32xf32>
    %c0_27 = arith.constant 0 : index
    %c0_28 = arith.constant 0 : index
    %173 = vector.load %arg6[%c0_27, %c0_28] : memref<1x32xf32, #tpu.memory_space<vmem>>, vector<1x32xf32>
    %174 = vector.broadcast %173 : vector<1x32xf32> to vector<16x32xf32>
    %175 = arith.addf %172, %174 : vector<16x32xf32>
    %c0_29 = arith.constant 0 : index
    %c0_30 = arith.constant 0 : index
    %176 = vector.load %arg7[%c0_29, %c0_30] : memref<16x32xf32, #tpu.memory_space<vmem>>, vector<16x32xf32>
    tpu.vector_store %arg7[%c0_29, %c0_30], %175 {strides = array<i32>} : memref<16x32xf32, #tpu.memory_space<vmem>>, vector<16x32xf32>,
    return
  }
  func.func @transform_0(%arg0: i32) -> (i32, i32) {
    %c0_i32 = arith.constant 0 : i32
    %c0_i32_0 = arith.constant 0 : i32
    %c0_i32_1 = arith.constant 0 : i32
    return %c0_i32, %c0_i32_0 : i32, i32
  }
  func.func @transform_1(%arg0: i32) -> (i32, i32) {
    %c0_i32 = arith.constant 0 : i32
    %c0_i32_0 = arith.constant 0 : i32
    %c0_i32_1 = arith.constant 0 : i32
    return %c0_i32, %c0_i32_0 : i32, i32
  }
  func.func @transform_2(%arg0: i32) -> (i32, i32) {
    %c0_i32 = arith.constant 0 : i32
    %c0_i32_0 = arith.constant 0 : i32
    %c0_i32_1 = arith.constant 0 : i32
    return %c0_i32, %c0_i32_0 : i32, i32
  }
  func.func @transform_3(%arg0: i32) -> (i32, i32) {
    %c0_i32 = arith.constant 0 : i32
    %c0_i32_0 = arith.constant 0 : i32
    %c0_i32_1 = arith.constant 0 : i32
    return %c0_i32, %c0_i32_0 : i32, i32
  }
  func.func @transform_4(%arg0: i32) -> (i32, i32) {
    %c0_i32 = arith.constant 0 : i32
    %c0_i32_0 = arith.constant 0 : i32
    %c0_i32_1 = arith.constant 0 : i32
    return %c0_i32, %c0_i32_0 : i32, i32
  }
  func.func @transform_5(%arg0: i32) -> (i32, i32) {
    %c0_i32 = arith.constant 0 : i32
    %c0_i32_0 = arith.constant 0 : i32
    %c0_i32_1 = arith.constant 0 : i32
    return %c0_i32, %c0_i32_0 : i32, i32
  }
  func.func @transform_6(%arg0: i32) -> (i32, i32) {
    %c0_i32 = arith.constant 0 : i32
    %c0_i32_0 = arith.constant 0 : i32
    %c0_i32_1 = arith.constant 0 : i32
    return %c0_i32, %c0_i32_0 : i32, i32
  }
}

</mosaic_0001>

<llo_original>
// kernel: tpu_custom_call.1
$region0: #{tpu_custom_call.1}
  #allocation0 [shape = 'u32[]', space=smem, size = 0x4, offset = 0x4, fixed_abs, tag = 'smem constant byte address 0x4 - core index']
  #allocation1 [shape = 'u32[144,128]{1,0:T(1,128)}', space=vmem, size = 0x12000, scoped, tag = 'internal scratch']
  %s0 = inlined_call_operand.vmem [shape: s32[16,1], index: 0, kind: input, shape index: {}]
  %s1 = inlined_call_operand.hbm [shape: f32[9,128], index: 1, kind: input, shape index: {}]
  %s2 = inlined_call_operand.hbm [shape: f32[32,128], index: 2, kind: input, shape index: {}]
  %s3 = inlined_call_operand.hbm [shape: f32[32,32], index: 3, kind: input, shape index: {}]
  %s4 = inlined_call_operand.vmem [shape: f32[32,32], index: 4, kind: input, shape index: {}]
  %s5 = inlined_call_operand.vmem [shape: f32[1,32], index: 5, kind: input, shape index: {}]
  %s6 = inlined_call_operand.hbm [shape: f32[16,32], index: 6, kind: output, shape index: {}]
  %s7 = sld [smem:[#allocation0]]
  $region46: #{tpu_custom_call.1} parent=0
    _
  %s9 = ssub.s32 1, %s7
  %s10 = scalar_select 0, %s9, %s7
  $region1: #{tpu_custom_call.1} parent=0
    #allocation2 [shape = 'u8[8192]{0}', space=vmem, size = 0x2000, scoped, tag = 'input window, operand 1, single buffered']
    #allocation3 [shape = 's32[1]{0}', space=sflag, size = 0x4, scoped, tag = 'scoped memory for tpu_custom_call.1']
    #allocation4 [shape = 's32[1]{0}', space=sflag, size = 0x4, scoped, tag = 'scoped memory for tpu_custom_call.1']
    #allocation5 [shape = 'u8[16384]{0}', space=vmem, size = 0x4000, scoped, tag = 'input window, operand 2, single buffered']
    #allocation6 [shape = 's32[1]{0}', space=sflag, size = 0x4, scoped, tag = 'scoped memory for tpu_custom_call.1']
    #allocation7 [shape = 'u8[16384]{0}', space=vmem, size = 0x4000, scoped, tag = 'input window, operand 3, single buffered']
    #allocation8 [shape = 'u8[8192]{0}', space=vmem, size = 0x2000, scoped, tag = 'output window, operand 0, single buffered']
    %11 = vsyncpa [#allocation3], 0
    %12 = vsyncpa [#allocation6], 0
    %13 = vsyncpa [#allocation4], 0
    // Predicated region
    $region2: #{tpu_custom_call.1} parent=1 // pred_check
      _
    $region3: #{tpu_custom_call.1} parent=1 // pred_check_branch
      %15 = sbr.rel (0) target = $region5
    $region4: #{tpu_custom_call.1} parent=1 // pred_region
      _
    $region5: #{tpu_custom_call.1} parent=1 // pred_fallthru
      _
    // Predicated region
    $region6: #{tpu_custom_call.1} parent=1 // pred_check
      _
    $region7: #{tpu_custom_call.1} parent=1 // pred_check_branch
      %17 = sbr.rel (0) target = $region9
    $region8: #{tpu_custom_call.1} parent=1 // pred_region
      %s19 = ssub.s32 256, 256
      %20 = vsyncadd [#allocation3], %s19
      %s21 = sshll.u32 [#allocation2], 4
      %s22 = int_to_ptr.vmem [resolvable:$true] %s21
      %27 = dma.hbm_to_vmem [thread:$0]  %s1, 256, %s22, [#allocation3], 128, 128, 8
    $region9: #{tpu_custom_call.1} parent=1 // pred_fallthru
      _
    // Predicated region
    $region10: #{tpu_custom_call.1} parent=1 // pred_check
      _
    $region11: #{tpu_custom_call.1} parent=1 // pred_check_branch
      %29 = sbr.rel (0) target = $region13
    $region12: #{tpu_custom_call.1} parent=1 // pred_region
      %s31 = ssub.s32 512, 512
      %32 = vsyncadd [#allocation6], %s31
      %s33 = sshll.u32 [#allocation5], 4
      %s34 = int_to_ptr.vmem [resolvable:$true] %s33
      %39 = dma.hbm_to_vmem [thread:$0]  %s2, 512, %s34, [#allocation6], 128, 128, 8
    $region13: #{tpu_custom_call.1} parent=1 // pred_fallthru
      _
    // Predicated region
    $region14: #{tpu_custom_call.1} parent=1 // pred_check
      _
    $region15: #{tpu_custom_call.1} parent=1 // pred_check_branch
      %41 = sbr.rel (0) target = $region17
    $region16: #{tpu_custom_call.1} parent=1 // pred_region
      %s43 = ssub.s32 512, 512
      %44 = vsyncadd [#allocation6], %s43
      %s45 = sshll.u32 [#allocation7], 4
      %s46 = int_to_ptr.vmem [resolvable:$true] %s45
      %51 = dma.hbm_to_vmem [thread:$0]  %s3, 512, %s46, [#allocation6], 128, 128, 8
    $region17: #{tpu_custom_call.1} parent=1 // pred_fallthru
      _
    // Predicated region
    $region18: #{tpu_custom_call.1} parent=1 // pred_check
      _
    $region19: #{tpu_custom_call.1} parent=1 // pred_check_branch
      %53 = sbr.rel (0) target = $region21
    $region20: #{tpu_custom_call.1} parent=1 // pred_region
      _
    $region21: #{tpu_custom_call.1} parent=1 // pred_fallthru
      _
    // Predicated region
    $region22: #{tpu_custom_call.1} parent=1 // pred_check
      _
    $region23: #{tpu_custom_call.1} parent=1 // pred_check_branch
      %55 = sbr.rel (0) target = $region25
    $region24: #{tpu_custom_call.1} parent=1 // pred_region
      _
    $region25: #{tpu_custom_call.1} parent=1 // pred_fallthru
      _
    // Predicated region
    $region26: #{tpu_custom_call.1} parent=1 // pred_check
      _
    $region27: #{tpu_custom_call.1} parent=1 // pred_check_branch
      %57 = sbr.rel (0) target = $region29
    $region28: #{tpu_custom_call.1} parent=1 // pred_region
      %58 = dma.done [#allocation3], 256
    $region29: #{tpu_custom_call.1} parent=1 // pred_fallthru
      _
    // Predicated region
    $region30: #{tpu_custom_call.1} parent=1 // pred_check
      _
    $region31: #{tpu_custom_call.1} parent=1 // pred_check_branch
      %60 = sbr.rel (0) target = $region33
    $region32: #{tpu_custom_call.1} parent=1 // pred_region
      %61 = dma.done [#allocation6], 512
    $region33: #{tpu_custom_call.1} parent=1 // pred_fallthru
      _
    // Predicated region
    $region34: #{tpu_custom_call.1} parent=1 // pred_check
      _
    $region35: #{tpu_custom_call.1} parent=1 // pred_check_branch
      %63 = sbr.rel (0) target = $region37
    $region36: #{tpu_custom_call.1} parent=1 // pred_region
      %64 = dma.done [#allocation6], 512
    $region37: #{tpu_custom_call.1} parent=1 // pred_fallthru
      _
    %v65 = vlaneseq
    %v66 = vand.u32 %v65, 127
    %v67 = vld [vmem:[%s0] sm:$0xff]
    %v68 = vld [vmem:[%s0 + $0x8] sm:$0xff]
    %69 = vset.pattern.permute.xlu0 0
    %70 = vperm.xlu0 %69, %v67
    %v71 = vpop.permute.xlu0 %70
    %72 = vset.pattern.permute.xlu0 0
    %73 = vperm.xlu0 %72, %v68
    %v74 = vpop.permute.xlu0 %73
    %vm75 = vcmp.eq.s32.totalorder %v66, %v71
    %vm76 = vcmp.eq.s32.totalorder %v66, %v74
    %v77 = vsel %vm75, 1, 0
    %v78 = vsel %vm76, 1, 0
    %v79 = vcvt.s32.f32 %v77
    %v80 = vcvt.s32.f32 %v78
    %v81 = vld [vmem:[#allocation2] sm:$0xff]
    %v82 = vld [vmem:[#allocation2 + $0x8] sm:$0x1]
    %vm83 = vcmask 72704
    %v85 = vsel %vm83, %v79, 0
    %v88 = vsel %vm83, %v80, 0
    %vm90 = vcmask 1040384
    %v92 = vsel %vm90, %v82, 0
    %94 = vmatprep.subr.mxu0 0.0
    %95 = vmatpush1.msra.mxu0 %v81
    %96 = vmatprep.subr.mxu0 0.0
    %97 = vmatpush1.msra.mxu0 %v92
    %98 = vmatprep.subr.mxu0 0.0
    %99 = vmatpush1.msra.mxu0 0.0
    %100 = vmatprep.subr.mxu0 0.0
    %101 = vmatpush1.msra.mxu0 0.0
    %102 = vmatprep.subr.mxu0 0.0
    %103 = vmatpush1.msra.mxu0 0.0
    %104 = vmatprep.subr.mxu0 0.0
    %105 = vmatpush1.msra.mxu0 0.0
    %106 = vmatprep.subr.mxu0 0.0
    %107 = vmatpush1.msra.mxu0 0.0
    %108 = vmatprep.subr.mxu0 0.0
    %109 = vmatpush1.msra.mxu0 0.0
    %110 = vmatprep.subr.mxu0 0.0
    %111 = vmatpush1.msra.mxu0 0.0
    %112 = vmatprep.subr.mxu0 0.0
    %113 = vmatpush1.msra.mxu0 0.0
    %114 = vmatprep.subr.mxu0 0.0
    %115 = vmatpush1.msra.mxu0 0.0
    %116 = vmatprep.subr.mxu0 0.0
    %117 = vmatpush1.msra.mxu0 0.0
    %118 = vmatprep.subr.mxu0 0.0
    %119 = vmatpush1.msra.mxu0 0.0
    %120 = vmatprep.subr.mxu0 0.0
    %121 = vmatpush1.msra.mxu0 0.0
    %122 = vmatprep.subr.mxu0 0.0
    %123 = vmatpush1.msra.mxu0 0.0
    %124 = vmatprep.subr.mxu0 0.0
    %125 = vmatpush1.msra.mxu0 0.0
    %126 = vmatprep.subr.mxu0 0.0
    %127 = vmatpush1.msra.mxu0 0.0
    %128 = vmatprep.subr.mxu0 0.0
    %129 = vmatpush1.msra.mxu0 0.0
    %130 = vmatprep.subr.mxu0 0.0
    %131 = vmatpush1.msra.mxu0 0.0
    %132 = vmatprep.subr.mxu0 0.0
    %133 = vmatpush1.msra.mxu0 0.0
    %134 = vmatprep.subr.mxu0 0.0
    %135 = vmatpush1.msra.mxu0 0.0
    %136 = vmatprep.subr.mxu0 0.0
    %137 = vmatpush1.msra.mxu0 0.0
    %138 = vmatprep.subr.mxu0 0.0
    %139 = vmatpush1.msra.mxu0 0.0
    %140 = vmatprep.subr.mxu0 0.0
    %141 = vmatpush1.msra.mxu0 0.0
    %142 = vmatprep.subr.mxu0 0.0
    %143 = vmatpush1.msra.mxu0 0.0
    %144 = vmatprep.subr.mxu0 0.0
    %145 = vmatpush1.msra.mxu0 0.0
    %146 = vmatprep.subr.mxu0 0.0
    %147 = vmatpush1.msra.mxu0 0.0
    %148 = vmatprep.subr.mxu0 0.0
    %149 = vmatpush1.msra.mxu0 0.0
    %150 = vmatprep.subr.mxu0 0.0
    %151 = vmatpush1.msra.mxu0 0.0
    %152 = vmatprep.subr.mxu0 0.0
    %153 = vmatpush1.msra.mxu0 0.0
    %154 = vmatprep.subr.mxu0 0.0
    %155 = vmatpush1.msra.mxu0 0.0
    %156 = vmatprep.subr.mxu0 0.0
    %157 = vmatpush1.msra.mxu0 0.0
    %158 = vmatprep.mubr.f32.mxu0 0.0
    %159 = vmatmul.mubr.f32.gmra.mrb[0].mxu0 %v85
    %v160 = vpop.f32.mrb[0].mxu0
    %v161 = vadd.f32 0.0, %v160
    %v162 = vpop.f32.mrb[0].mxu0
    %163 = vmatprep.mubr.f32.mxu0 0.0
    %164 = vmatmul.mubr.f32.gmra.mrb[0].mxu0 %v88
    %v165 = vpop.f32.mrb[0].mxu0
    %v166 = vadd.f32 0.0, %v165
    %v167 = vpop.f32.mrb[0].mxu0
    %168 = vdwg.mxu0
    %v169 = vld [vmem:[#allocation5] sm:$0xff]
    %v170 = vld [vmem:[#allocation5 + $0x8] sm:$0xff]
    %v171 = vld [vmem:[#allocation5 + $0x10] sm:$0xff]
    %v172 = vld [vmem:[#allocation5 + $0x18] sm:$0xff]
    %v174 = vrot.slane %v166, 7
    %v176 = vsel %vm90, %v161, %v174
    %vm177 = vcmask 261120
    %v179 = vsel %vm177, 0.0, 0
    %181 = vmatprep.subr.mxu0 0.0
    %182 = vmatpush1.msra.mxu0 %v169
    %183 = vmatprep.subr.mxu0 0.0
    %184 = vmatpush1.msra.mxu0 %v170
    %185 = vmatprep.subr.mxu0 0.0
    %186 = vmatpush1.msra.mxu0 %v171
    %187 = vmatprep.subr.mxu0 0.0
    %188 = vmatpush1.msra.mxu0 %v172
    %189 = vmatprep.subr.mxu0 0.0
    %190 = vmatpush1.msra.mxu0 0.0
    %191 = vmatprep.subr.mxu0 0.0
    %192 = vmatpush1.msra.mxu0 0.0
    %193 = vmatprep.subr.mxu0 0.0
    %194 = vmatpush1.msra.mxu0 0.0
    %195 = vmatprep.subr.mxu0 0.0
    %196 = vmatpush1.msra.mxu0 0.0
    %197 = vmatprep.subr.mxu0 0.0
    %198 = vmatpush1.msra.mxu0 0.0
    %199 = vmatprep.subr.mxu0 0.0
    %200 = vmatpush1.msra.mxu0 0.0
    %201 = vmatprep.subr.mxu0 0.0
    %202 = vmatpush1.msra.mxu0 0.0
    %203 = vmatprep.subr.mxu0 0.0
    %204 = vmatpush1.msra.mxu0 0.0
    %205 = vmatprep.subr.mxu0 0.0
    %206 = vmatpush1.msra.mxu0 0.0
    %207 = vmatprep.subr.mxu0 0.0
    %208 = vmatpush1.msra.mxu0 0.0
    %209 = vmatprep.subr.mxu0 0.0
    %210 = vmatpush1.msra.mxu0 0.0
    %211 = vmatprep.subr.mxu0 0.0
    %212 = vmatpush1.msra.mxu0 0.0
    %213 = vmatprep.subr.mxu0 0.0
    %214 = vmatpush1.msra.mxu0 0.0
    %215 = vmatprep.subr.mxu0 0.0
    %216 = vmatpush1.msra.mxu0 0.0
    %217 = vmatprep.subr.mxu0 0.0
    %218 = vmatpush1.msra.mxu0 0.0
    %219 = vmatprep.subr.mxu0 0.0
    %220 = vmatpush1.msra.mxu0 0.0
    %221 = vmatprep.subr.mxu0 0.0
    %222 = vmatpush1.msra.mxu0 0.0
    %223 = vmatprep.subr.mxu0 0.0
    %224 = vmatpush1.msra.mxu0 0.0
    %225 = vmatprep.subr.mxu0 0.0
    %226 = vmatpush1.msra.mxu0 0.0
    %227 = vmatprep.subr.mxu0 0.0
    %228 = vmatpush1.msra.mxu0 0.0
    %229 = vmatprep.subr.mxu0 0.0
    %230 = vmatpush1.msra.mxu0 0.0
    %231 = vmatprep.subr.mxu0 0.0
    %232 = vmatpush1.msra.mxu0 0.0
    %233 = vmatprep.subr.mxu0 0.0
    %234 = vmatpush1.msra.mxu0 0.0
    %235 = vmatprep.subr.mxu0 0.0
    %236 = vmatpush1.msra.mxu0 0.0
    %237 = vmatprep.subr.mxu0 0.0
    %238 = vmatpush1.msra.mxu0 0.0
    %239 = vmatprep.subr.mxu0 0.0
    %240 = vmatpush1.msra.mxu0 0.0
    %241 = vmatprep.subr.mxu0 0.0
    %242 = vmatpush1.msra.mxu0 0.0
    %243 = vmatprep.subr.mxu0 0.0
    %244 = vmatpush1.msra.mxu0 0.0
    %245 = vmatprep.mubr.f32.mxu0 0.0
    %246 = vmatmul.mubr.f32.gmra.mrb[0].mxu0 %v179
    %v247 = vpop.f32.mrb[0].mxu0
    %v248 = vadd.f32 0.0, %v247
    %v249 = vpop.f32.mrb[0].mxu0
    %250 = vdwg.mxu0
    %v251 = vadd.f32 %v176, %v248
    %v252 = vxor.u32 %v251, 2147483648
    %v253 = vmul.f32 %v252, 1.442695
    %v254 = vpow.pop %v253
    %v255 = vadd.f32 %v254, 1.0
    %v256 = vrcp.pop %v255
    %v257 = vmul.f32 1.0, %v256
    %v258 = vtanh.pop %v251
    %v259 = vmul.f32 %v257, 0.0
    %261 = vrot.lane.b32.xlu0 %v258, 64
    %v262 = vpop.permute.xlu0 %261
    %v264 = vmul.f32 %v257, %v262
    %266 = vrot.lane.b32.xlu0 %v264, 32
    %v267 = vpop.permute.xlu0 %266
    %v269 = vadd.f32 %v259, %v267
    %v270 = vtanh.pop %v269
    %272 = vrot.lane.b32.xlu0 %v270, 64
    %v273 = vpop.permute.xlu0 %272
    %v275 = vmul.f32 %v257, %v273
    %v277 = vrot.slane %v161, 1
    %v279 = vsel %vm90, %v277, %v166
    %281 = vrot.lane.b32.xlu0 %v275, 32
    %v282 = vpop.permute.xlu0 %281
    %v283 = vsel %vm177, %v282, 0
    %285 = vmatprep.subr.mxu0 0.0
    %286 = vmatpush1.msra.mxu0 %v169
    %287 = vmatprep.subr.mxu0 0.0
    %288 = vmatpush1.msra.mxu0 %v170
    %289 = vmatprep.subr.mxu0 0.0
    %290 = vmatpush1.msra.mxu0 %v171
    %291 = vmatprep.subr.mxu0 0.0
    %292 = vmatpush1.msra.mxu0 %v172
    %293 = vmatprep.subr.mxu0 0.0
    %294 = vmatpush1.msra.mxu0 0.0
    %295 = vmatprep.subr.mxu0 0.0
    %296 = vmatpush1.msra.mxu0 0.0
    %297 = vmatprep.subr.mxu0 0.0
    %298 = vmatpush1.msra.mxu0 0.0
    %299 = vmatprep.subr.mxu0 0.0
    %300 = vmatpush1.msra.mxu0 0.0
    %301 = vmatprep.subr.mxu0 0.0
    %302 = vmatpush1.msra.mxu0 0.0
    %303 = vmatprep.subr.mxu0 0.0
    %304 = vmatpush1.msra.mxu0 0.0
    %305 = vmatprep.subr.mxu0 0.0
    %306 = vmatpush1.msra.mxu0 0.0
    %307 = vmatprep.subr.mxu0 0.0
    %308 = vmatpush1.msra.mxu0 0.0
    %309 = vmatprep.subr.mxu0 0.0
    %310 = vmatpush1.msra.mxu0 0.0
    %311 = vmatprep.subr.mxu0 0.0
    %312 = vmatpush1.msra.mxu0 0.0
    %313 = vmatprep.subr.mxu0 0.0
    %314 = vmatpush1.msra.mxu0 0.0
    %315 = vmatprep.subr.mxu0 0.0
    %316 = vmatpush1.msra.mxu0 0.0
    %317 = vmatprep.subr.mxu0 0.0
    %318 = vmatpush1.msra.mxu0 0.0
    %319 = vmatprep.subr.mxu0 0.0
    %320 = vmatpush1.msra.mxu0 0.0
    %321 = vmatprep.subr.mxu0 0.0
    %322 = vmatpush1.msra.mxu0 0.0
    %323 = vmatprep.subr.mxu0 0.0
    %324 = vmatpush1.msra.mxu0 0.0
    %325 = vmatprep.subr.mxu0 0.0
    %326 = vmatpush1.msra.mxu0 0.0
    %327 = vmatprep.subr.mxu0 0.0
    %328 = vmatpush1.msra.mxu0 0.0
    %329 = vmatprep.subr.mxu0 0.0
    %330 = vmatpush1.msra.mxu0 0.0
    %331 = vmatprep.subr.mxu0 0.0
    %332 = vmatpush1.msra.mxu0 0.0
    %333 = vmatprep.subr.mxu0 0.0
    %334 = vmatpush1.msra.mxu0 0.0
    %335 = vmatprep.subr.mxu0 0.0
    %336 = vmatpush1.msra.mxu0 0.0
    %337 = vmatprep.subr.mxu0 0.0
    %338 = vmatpush1.msra.mxu0 0.0
    %339 = vmatprep.subr.mxu0 0.0
    %340 = vmatpush1.msra.mxu0 0.0
    %341 = vmatprep.subr.mxu0 0.0
    %342 = vmatpush1.msra.mxu0 0.0
    %343 = vmatprep.subr.mxu0 0.0
    %344 = vmatpush1.msra.mxu0 0.0
    %345 = vmatprep.subr.mxu0 0.0
    %346 = vmatpush1.msra.mxu0 0.0
    %347 = vmatprep.subr.mxu0 0.0
    %348 = vmatpush1.msra.mxu0 0.0
    %349 = vmatprep.mubr.f32.mxu0 0.0
    %350 = vmatmul.mubr.f32.gmra.mrb[0].mxu0 %v283
    %v351 = vpop.f32.mrb[0].mxu0
    %v352 = vadd.f32 0.0, %v351
    %v353 = vpop.f32.mrb[0].mxu0
    %354 = vdwg.mxu0
    %v355 = vadd.f32 %v279, %v352
    %v356 = vxor.u32 %v355, 2147483648
    %v357 = vmul.f32 %v356, 1.442695
    %v358 = vpow.pop %v357
    %v359 = vadd.f32 %v358, 1.0
    %v360 = vrcp.pop %v359
    %v361 = vmul.f32 1.0, %v360
    %v362 = vtanh.pop %v355
    %v363 = vmul.f32 %v361, %v269
    %365 = vrot.lane.b32.xlu0 %v362, 64
    %v366 = vpop.permute.xlu0 %365
    %v368 = vmul.f32 %v361, %v366
    %370 = vrot.lane.b32.xlu0 %v368, 32
    %v371 = vpop.permute.xlu0 %370
    %v373 = vadd.f32 %v363, %v371
    %v374 = vtanh.pop %v373
    %376 = vrot.lane.b32.xlu0 %v374, 64
    %v377 = vpop.permute.xlu0 %376
    %v379 = vmul.f32 %v361, %v377
    %v380 = vrot.slane %v161, 2
    %v382 = vrot.slane %v166, 1
    %v384 = vsel %vm90, %v380, %v382
    %386 = vrot.lane.b32.xlu0 %v379, 32
    %v387 = vpop.permute.xlu0 %386
    %v388 = vsel %vm177, %v387, 0
    %390 = vmatprep.subr.mxu0 0.0
    %391 = vmatpush1.msra.mxu0 %v169
    %392 = vmatprep.subr.mxu0 0.0
    %393 = vmatpush1.msra.mxu0 %v170
    %394 = vmatprep.subr.mxu0 0.0
    %395 = vmatpush1.msra.mxu0 %v171
    %396 = vmatprep.subr.mxu0 0.0
    %397 = vmatpush1.msra.mxu0 %v172
    %398 = vmatprep.subr.mxu0 0.0
    %399 = vmatpush1.msra.mxu0 0.0
    %400 = vmatprep.subr.mxu0 0.0
    %401 = vmatpush1.msra.mxu0 0.0
    %402 = vmatprep.subr.mxu0 0.0
    %403 = vmatpush1.msra.mxu0 0.0
    %404 = vmatprep.subr.mxu0 0.0
    %405 = vmatpush1.msra.mxu0 0.0
    %406 = vmatprep.subr.mxu0 0.0
    %407 = vmatpush1.msra.mxu0 0.0
    %408 = vmatprep.subr.mxu0 0.0
    %409 = vmatpush1.msra.mxu0 0.0
    %410 = vmatprep.subr.mxu0 0.0
    %411 = vmatpush1.msra.mxu0 0.0
    %412 = vmatprep.subr.mxu0 0.0
    %413 = vmatpush1.msra.mxu0 0.0
    %414 = vmatprep.subr.mxu0 0.0
    %415 = vmatpush1.msra.mxu0 0.0
    %416 = vmatprep.subr.mxu0 0.0
    %417 = vmatpush1.msra.mxu0 0.0
    %418 = vmatprep.subr.mxu0 0.0
    %419 = vmatpush1.msra.mxu0 0.0
    %420 = vmatprep.subr.mxu0 0.0
    %421 = vmatpush1.msra.mxu0 0.0
    %422 = vmatprep.subr.mxu0 0.0
    %423 = vmatpush1.msra.mxu0 0.0
    %424 = vmatprep.subr.mxu0 0.0
    %425 = vmatpush1.msra.mxu0 0.0
    %426 = vmatprep.subr.mxu0 0.0
    %427 = vmatpush1.msra.mxu0 0.0
    %428 = vmatprep.subr.mxu0 0.0
    %429 = vmatpush1.msra.mxu0 0.0
    %430 = vmatprep.subr.mxu0 0.0
    %431 = vmatpush1.msra.mxu0 0.0
    %432 = vmatprep.subr.mxu0 0.0
    %433 = vmatpush1.msra.mxu0 0.0
    %434 = vmatprep.subr.mxu0 0.0
    %435 = vmatpush1.msra.mxu0 0.0
    %436 = vmatprep.subr.mxu0 0.0
    %437 = vmatpush1.msra.mxu0 0.0
    %438 = vmatprep.subr.mxu0 0.0
    %439 = vmatpush1.msra.mxu0 0.0
    %440 = vmatprep.subr.mxu0 0.0
    %441 = vmatpush1.msra.mxu0 0.0
    %442 = vmatprep.subr.mxu0 0.0
    %443 = vmatpush1.msra.mxu0 0.0
    %444 = vmatprep.subr.mxu0 0.0
    %445 = vmatpush1.msra.mxu0 0.0
    %446 = vmatprep.subr.mxu0 0.0
    %447 = vmatpush1.msra.mxu0 0.0
    %448 = vmatprep.subr.mxu0 0.0
    %449 = vmatpush1.msra.mxu0 0.0
    %450 = vmatprep.subr.mxu0 0.0
    %451 = vmatpush1.msra.mxu0 0.0
    %452 = vmatprep.subr.mxu0 0.0
    %453 = vmatpush1.msra.mxu0 0.0
    %454 = vmatprep.mubr.f32.mxu0 0.0
    %455 = vmatmul.mubr.f32.gmra.mrb[0].mxu0 %v388
    %v456 = vpop.f32.mrb[0].mxu0
    %v457 = vadd.f32 0.0, %v456
    %v458 = vpop.f32.mrb[0].mxu0
    %459 = vdwg.mxu0
    %v460 = vadd.f32 %v384, %v457
    %v461 = vxor.u32 %v460, 2147483648
    %v462 = vmul.f32 %v461, 1.442695
    %v463 = vpow.pop %v462
    %v464 = vadd.f32 %v463, 1.0
    %v465 = vrcp.pop %v464
    %v466 = vmul.f32 1.0, %v465
    %v467 = vtanh.pop %v460
    %v468 = vmul.f32 %v466, %v373
    %470 = vrot.lane.b32.xlu0 %v467, 64
    %v471 = vpop.permute.xlu0 %470
    %v473 = vmul.f32 %v466, %v471
    %475 = vrot.lane.b32.xlu0 %v473, 32
    %v476 = vpop.permute.xlu0 %475
    %v478 = vadd.f32 %v468, %v476
    %v479 = vtanh.pop %v478
    %481 = vrot.lane.b32.xlu0 %v479, 64
    %v482 = vpop.permute.xlu0 %481
    %v484 = vmul.f32 %v466, %v482
    %v485 = vrot.slane %v161, 3
    %v487 = vrot.slane %v166, 2
    %v489 = vsel %vm90, %v485, %v487
    %491 = vrot.lane.b32.xlu0 %v484, 32
    %v492 = vpop.permute.xlu0 %491
    %v493 = vsel %vm177, %v492, 0
    %495 = vmatprep.subr.mxu0 0.0
    %496 = vmatpush1.msra.mxu0 %v169
    %497 = vmatprep.subr.mxu0 0.0
    %498 = vmatpush1.msra.mxu0 %v170
    %499 = vmatprep.subr.mxu0 0.0
    %500 = vmatpush1.msra.mxu0 %v171
    %501 = vmatprep.subr.mxu0 0.0
    %502 = vmatpush1.msra.mxu0 %v172
    %503 = vmatprep.subr.mxu0 0.0
    %504 = vmatpush1.msra.mxu0 0.0
    %505 = vmatprep.subr.mxu0 0.0
    %506 = vmatpush1.msra.mxu0 0.0
    %507 = vmatprep.subr.mxu0 0.0
    %508 = vmatpush1.msra.mxu0 0.0
    %509 = vmatprep.subr.mxu0 0.0
    %510 = vmatpush1.msra.mxu0 0.0
    %511 = vmatprep.subr.mxu0 0.0
    %512 = vmatpush1.msra.mxu0 0.0
    %513 = vmatprep.subr.mxu0 0.0
    %514 = vmatpush1.msra.mxu0 0.0
    %515 = vmatprep.subr.mxu0 0.0
    %516 = vmatpush1.msra.mxu0 0.0
    %517 = vmatprep.subr.mxu0 0.0
    %518 = vmatpush1.msra.mxu0 0.0
    %519 = vmatprep.subr.mxu0 0.0
    %520 = vmatpush1.msra.mxu0 0.0
    %521 = vmatprep.subr.mxu0 0.0
    %522 = vmatpush1.msra.mxu0 0.0
    %523 = vmatprep.subr.mxu0 0.0
    %524 = vmatpush1.msra.mxu0 0.0
    %525 = vmatprep.subr.mxu0 0.0
    %526 = vmatpush1.msra.mxu0 0.0
    %527 = vmatprep.subr.mxu0 0.0
    %528 = vmatpush1.msra.mxu0 0.0
    %529 = vmatprep.subr.mxu0 0.0
    %530 = vmatpush1.msra.mxu0 0.0
    %531 = vmatprep.subr.mxu0 0.0
    %532 = vmatpush1.msra.mxu0 0.0
    %533 = vmatprep.subr.mxu0 0.0
    %534 = vmatpush1.msra.mxu0 0.0
    %535 = vmatprep.subr.mxu0 0.0
    %536 = vmatpush1.msra.mxu0 0.0
    %537 = vmatprep.subr.mxu0 0.0
    %538 = vmatpush1.msra.mxu0 0.0
    %539 = vmatprep.subr.mxu0 0.0
    %540 = vmatpush1.msra.mxu0 0.0
    %541 = vmatprep.subr.mxu0 0.0
    %542 = vmatpush1.msra.mxu0 0.0
    %543 = vmatprep.subr.mxu0 0.0
    %544 = vmatpush1.msra.mxu0 0.0
    %545 = vmatprep.subr.mxu0 0.0
    %546 = vmatpush1.msra.mxu0 0.0
    %547 = vmatprep.subr.mxu0 0.0
    %548 = vmatpush1.msra.mxu0 0.0
    %549 = vmatprep.subr.mxu0 0.0
    %550 = vmatpush1.msra.mxu0 0.0
    %551 = vmatprep.subr.mxu0 0.0
    %552 = vmatpush1.msra.mxu0 0.0
    %553 = vmatprep.subr.mxu0 0.0
    %554 = vmatpush1.msra.mxu0 0.0
    %555 = vmatprep.subr.mxu0 0.0
    %556 = vmatpush1.msra.mxu0 0.0
    %557 = vmatprep.subr.mxu0 0.0
    %558 = vmatpush1.msra.mxu0 0.0
    %559 = vmatprep.mubr.f32.mxu0 0.0
    %560 = vmatmul.mubr.f32.gmra.mrb[0].mxu0 %v493
    %v561 = vpop.f32.mrb[0].mxu0
    %v562 = vadd.f32 0.0, %v561
    %v563 = vpop.f32.mrb[0].mxu0
    %564 = vdwg.mxu0
    %v565 = vadd.f32 %v489, %v562
    %v566 = vxor.u32 %v565, 2147483648
    %v567 = vmul.f32 %v566, 1.442695
    %v568 = vpow.pop %v567
    %v569 = vadd.f32 %v568, 1.0
    %v570 = vrcp.pop %v569
    %v571 = vmul.f32 1.0, %v570
    %v572 = vtanh.pop %v565
    %v573 = vmul.f32 %v571, %v478
    %575 = vrot.lane.b32.xlu0 %v572, 64
    %v576 = vpop.permute.xlu0 %575
    %v578 = vmul.f32 %v571, %v576
    %580 = vrot.lane.b32.xlu0 %v578, 32
    %v581 = vpop.permute.xlu0 %580
    %v583 = vadd.f32 %v573, %v581
    %v584 = vtanh.pop %v583
    %586 = vrot.lane.b32.xlu0 %v584, 64
    %v587 = vpop.permute.xlu0 %586
    %v589 = vmul.f32 %v571, %v587
    %v590 = vrot.slane %v161, 4
    %v592 = vrot.slane %v166, 3
    %v594 = vsel %vm90, %v590, %v592
    %596 = vrot.lane.b32.xlu0 %v589, 32
    %v597 = vpop.permute.xlu0 %596
    %v598 = vsel %vm177, %v597, 0
    %600 = vmatprep.subr.mxu0 0.0
    %601 = vmatpush1.msra.mxu0 %v169
    %602 = vmatprep.subr.mxu0 0.0
    %603 = vmatpush1.msra.mxu0 %v170
    %604 = vmatprep.subr.mxu0 0.0
    %605 = vmatpush1.msra.mxu0 %v171
    %606 = vmatprep.subr.mxu0 0.0
    %607 = vmatpush1.msra.mxu0 %v172
    %608 = vmatprep.subr.mxu0 0.0
    %609 = vmatpush1.msra.mxu0 0.0
    %610 = vmatprep.subr.mxu0 0.0
    %611 = vmatpush1.msra.mxu0 0.0
    %612 = vmatprep.subr.mxu0 0.0
    %613 = vmatpush1.msra.mxu0 0.0
    %614 = vmatprep.subr.mxu0 0.0
    %615 = vmatpush1.msra.mxu0 0.0
    %616 = vmatprep.subr.mxu0 0.0
    %617 = vmatpush1.msra.mxu0 0.0
    %618 = vmatprep.subr.mxu0 0.0
    %619 = vmatpush1.msra.mxu0 0.0
    %620 = vmatprep.subr.mxu0 0.0
    %621 = vmatpush1.msra.mxu0 0.0
    %622 = vmatprep.subr.mxu0 0.0
    %623 = vmatpush1.msra.mxu0 0.0
    %624 = vmatprep.subr.mxu0 0.0
    %625 = vmatpush1.msra.mxu0 0.0
    %626 = vmatprep.subr.mxu0 0.0
    %627 = vmatpush1.msra.mxu0 0.0
    %628 = vmatprep.subr.mxu0 0.0
    %629 = vmatpush1.msra.mxu0 0.0
    %630 = vmatprep.subr.mxu0 0.0
    %631 = vmatpush1.msra.mxu0 0.0
    %632 = vmatprep.subr.mxu0 0.0
    %633 = vmatpush1.msra.mxu0 0.0
    %634 = vmatprep.subr.mxu0 0.0
    %635 = vmatpush1.msra.mxu0 0.0
    %636 = vmatprep.subr.mxu0 0.0
    %637 = vmatpush1.msra.mxu0 0.0
    %638 = vmatprep.subr.mxu0 0.0
    %639 = vmatpush1.msra.mxu0 0.0
    %640 = vmatprep.subr.mxu0 0.0
    %641 = vmatpush1.msra.mxu0 0.0
    %642 = vmatprep.subr.mxu0 0.0
    %643 = vmatpush1.msra.mxu0 0.0
    %644 = vmatprep.subr.mxu0 0.0
    %645 = vmatpush1.msra.mxu0 0.0
    %646 = vmatprep.subr.mxu0 0.0
    %647 = vmatpush1.msra.mxu0 0.0
    %648 = vmatprep.subr.mxu0 0.0
    %649 = vmatpush1.msra.mxu0 0.0
    %650 = vmatprep.subr.mxu0 0.0
    %651 = vmatpush1.msra.mxu0 0.0
    %652 = vmatprep.subr.mxu0 0.0
    %653 = vmatpush1.msra.mxu0 0.0
    %654 = vmatprep.subr.mxu0 0.0
    %655 = vmatpush1.msra.mxu0 0.0
    %656 = vmatprep.subr.mxu0 0.0
    %657 = vmatpush1.msra.mxu0 0.0
    %658 = vmatprep.subr.mxu0 0.0
    %659 = vmatpush1.msra.mxu0 0.0
    %660 = vmatprep.subr.mxu0 0.0
    %661 = vmatpush1.msra.mxu0 0.0
    %662 = vmatprep.subr.mxu0 0.0
    %663 = vmatpush1.msra.mxu0 0.0
    %664 = vmatprep.mubr.f32.mxu0 0.0
    %665 = vmatmul.mubr.f32.gmra.mrb[0].mxu0 %v598
    %v666 = vpop.f32.mrb[0].mxu0
    %v667 = vadd.f32 0.0, %v666
    %v668 = vpop.f32.mrb[0].mxu0
    %669 = vdwg.mxu0
    %v670 = vadd.f32 %v594, %v667
    %v671 = vxor.u32 %v670, 2147483648
    %v672 = vmul.f32 %v671, 1.442695
    %v673 = vpow.pop %v672
    %v674 = vadd.f32 %v673, 1.0
    %v675 = vrcp.pop %v674
    %v676 = vmul.f32 1.0, %v675
    %v677 = vtanh.pop %v670
    %v678 = vmul.f32 %v676, %v583
    %680 = vrot.lane.b32.xlu0 %v677, 64
    %v681 = vpop.permute.xlu0 %680
    %v683 = vmul.f32 %v676, %v681
    %685 = vrot.lane.b32.xlu0 %v683, 32
    %v686 = vpop.permute.xlu0 %685
    %v688 = vadd.f32 %v678, %v686
    %v689 = vtanh.pop %v688
    %691 = vrot.lane.b32.xlu0 %v689, 64
    %v692 = vpop.permute.xlu0 %691
    %v694 = vmul.f32 %v676, %v692
    %v695 = vrot.slane %v161, 5
    %v697 = vrot.slane %v166, 4
    %v699 = vsel %vm90, %v695, %v697
    %701 = vrot.lane.b32.xlu0 %v694, 32
    %v702 = vpop.permute.xlu0 %701
    %v703 = vsel %vm177, %v702, 0
    %705 = vmatprep.subr.mxu0 0.0
    %706 = vmatpush1.msra.mxu0 %v169
    %707 = vmatprep.subr.mxu0 0.0
    %708 = vmatpush1.msra.mxu0 %v170
    %709 = vmatprep.subr.mxu0 0.0
    %710 = vmatpush1.msra.mxu0 %v171
    %711 = vmatprep.subr.mxu0 0.0
    %712 = vmatpush1.msra.mxu0 %v172
    %713 = vmatprep.subr.mxu0 0.0
    %714 = vmatpush1.msra.mxu0 0.0
    %715 = vmatprep.subr.mxu0 0.0
    %716 = vmatpush1.msra.mxu0 0.0
    %717 = vmatprep.subr.mxu0 0.0
    %718 = vmatpush1.msra.mxu0 0.0
    %719 = vmatprep.subr.mxu0 0.0
    %720 = vmatpush1.msra.mxu0 0.0
    %721 = vmatprep.subr.mxu0 0.0
    %722 = vmatpush1.msra.mxu0 0.0
    %723 = vmatprep.subr.mxu0 0.0
    %724 = vmatpush1.msra.mxu0 0.0
    %725 = vmatprep.subr.mxu0 0.0
    %726 = vmatpush1.msra.mxu0 0.0
    %727 = vmatprep.subr.mxu0 0.0
    %728 = vmatpush1.msra.mxu0 0.0
    %729 = vmatprep.subr.mxu0 0.0
    %730 = vmatpush1.msra.mxu0 0.0
    %731 = vmatprep.subr.mxu0 0.0
    %732 = vmatpush1.msra.mxu0 0.0
    %733 = vmatprep.subr.mxu0 0.0
    %734 = vmatpush1.msra.mxu0 0.0
    %735 = vmatprep.subr.mxu0 0.0
    %736 = vmatpush1.msra.mxu0 0.0
    %737 = vmatprep.subr.mxu0 0.0
    %738 = vmatpush1.msra.mxu0 0.0
    %739 = vmatprep.subr.mxu0 0.0
    %740 = vmatpush1.msra.mxu0 0.0
    %741 = vmatprep.subr.mxu0 0.0
    %742 = vmatpush1.msra.mxu0 0.0
    %743 = vmatprep.subr.mxu0 0.0
    %744 = vmatpush1.msra.mxu0 0.0
    %745 = vmatprep.subr.mxu0 0.0
    %746 = vmatpush1.msra.mxu0 0.0
    %747 = vmatprep.subr.mxu0 0.0
    %748 = vmatpush1.msra.mxu0 0.0
    %749 = vmatprep.subr.mxu0 0.0
    %750 = vmatpush1.msra.mxu0 0.0
    %751 = vmatprep.subr.mxu0 0.0
    %752 = vmatpush1.msra.mxu0 0.0
    %753 = vmatprep.subr.mxu0 0.0
    %754 = vmatpush1.msra.mxu0 0.0
    %755 = vmatprep.subr.mxu0 0.0
    %756 = vmatpush1.msra.mxu0 0.0
    %757 = vmatprep.subr.mxu0 0.0
    %758 = vmatpush1.msra.mxu0 0.0
    %759 = vmatprep.subr.mxu0 0.0
    %760 = vmatpush1.msra.mxu0 0.0
    %761 = vmatprep.subr.mxu0 0.0
    %762 = vmatpush1.msra.mxu0 0.0
    %763 = vmatprep.subr.mxu0 0.0
    %764 = vmatpush1.msra.mxu0 0.0
    %765 = vmatprep.subr.mxu0 0.0
    %766 = vmatpush1.msra.mxu0 0.0
    %767 = vmatprep.subr.mxu0 0.0
    %768 = vmatpush1.msra.mxu0 0.0
    %769 = vmatprep.mubr.f32.mxu0 0.0
    %770 = vmatmul.mubr.f32.gmra.mrb[0].mxu0 %v703
    %v771 = vpop.f32.mrb[0].mxu0
    %v772 = vadd.f32 0.0, %v771
    %v773 = vpop.f32.mrb[0].mxu0
    %774 = vdwg.mxu0
    %v775 = vadd.f32 %v699, %v772
    %v776 = vxor.u32 %v775, 2147483648
    %v777 = vmul.f32 %v776, 1.442695
    %v778 = vpow.pop %v777
    %v779 = vadd.f32 %v778, 1.0
    %v780 = vrcp.pop %v779
    %v781 = vmul.f32 1.0, %v780
    %v782 = vtanh.pop %v775
    %v783 = vmul.f32 %v781, %v688
    %785 = vrot.lane.b32.xlu0 %v782, 64
    %v786 = vpop.permute.xlu0 %785
    %v788 = vmul.f32 %v781, %v786
    %790 = vrot.lane.b32.xlu0 %v788, 32
    %v791 = vpop.permute.xlu0 %790
    %v793 = vadd.f32 %v783, %v791
    %v794 = vtanh.pop %v793
    %796 = vrot.lane.b32.xlu0 %v794, 64
    %v797 = vpop.permute.xlu0 %796
    %v799 = vmul.f32 %v781, %v797
    %v800 = vrot.slane %v161, 6
    %v802 = vrot.slane %v166, 5
    %v804 = vsel %vm90, %v800, %v802
    %806 = vrot.lane.b32.xlu0 %v799, 32
    %v807 = vpop.permute.xlu0 %806
    %v808 = vsel %vm177, %v807, 0
    %810 = vmatprep.subr.mxu0 0.0
    %811 = vmatpush1.msra.mxu0 %v169
    %812 = vmatprep.subr.mxu0 0.0
    %813 = vmatpush1.msra.mxu0 %v170
    %814 = vmatprep.subr.mxu0 0.0
    %815 = vmatpush1.msra.mxu0 %v171
    %816 = vmatprep.subr.mxu0 0.0
    %817 = vmatpush1.msra.mxu0 %v172
    %818 = vmatprep.subr.mxu0 0.0
    %819 = vmatpush1.msra.mxu0 0.0
    %820 = vmatprep.subr.mxu0 0.0
    %821 = vmatpush1.msra.mxu0 0.0
    %822 = vmatprep.subr.mxu0 0.0
    %823 = vmatpush1.msra.mxu0 0.0
    %824 = vmatprep.subr.mxu0 0.0
    %825 = vmatpush1.msra.mxu0 0.0
    %826 = vmatprep.subr.mxu0 0.0
    %827 = vmatpush1.msra.mxu0 0.0
    %828 = vmatprep.subr.mxu0 0.0
    %829 = vmatpush1.msra.mxu0 0.0
    %830 = vmatprep.subr.mxu0 0.0
    %831 = vmatpush1.msra.mxu0 0.0
    %832 = vmatprep.subr.mxu0 0.0
    %833 = vmatpush1.msra.mxu0 0.0
    %834 = vmatprep.subr.mxu0 0.0
    %835 = vmatpush1.msra.mxu0 0.0
    %836 = vmatprep.subr.mxu0 0.0
    %837 = vmatpush1.msra.mxu0 0.0
    %838 = vmatprep.subr.mxu0 0.0
    %839 = vmatpush1.msra.mxu0 0.0
    %840 = vmatprep.subr.mxu0 0.0
    %841 = vmatpush1.msra.mxu0 0.0
    %842 = vmatprep.subr.mxu0 0.0
    %843 = vmatpush1.msra.mxu0 0.0
    %844 = vmatprep.subr.mxu0 0.0
    %845 = vmatpush1.msra.mxu0 0.0
    %846 = vmatprep.subr.mxu0 0.0
    %847 = vmatpush1.msra.mxu0 0.0
    %848 = vmatprep.subr.mxu0 0.0
    %849 = vmatpush1.msra.mxu0 0.0
    %850 = vmatprep.subr.mxu0 0.0
    %851 = vmatpush1.msra.mxu0 0.0
    %852 = vmatprep.subr.mxu0 0.0
    %853 = vmatpush1.msra.mxu0 0.0
    %854 = vmatprep.subr.mxu0 0.0
    %855 = vmatpush1.msra.mxu0 0.0
    %856 = vmatprep.subr.mxu0 0.0
    %857 = vmatpush1.msra.mxu0 0.0
    %858 = vmatprep.subr.mxu0 0.0
    %859 = vmatpush1.msra.mxu0 0.0
    %860 = vmatprep.subr.mxu0 0.0
    %861 = vmatpush1.msra.mxu0 0.0
    %862 = vmatprep.subr.mxu0 0.0
    %863 = vmatpush1.msra.mxu0 0.0
    %864 = vmatprep.subr.mxu0 0.0
    %865 = vmatpush1.msra.mxu0 0.0
    %866 = vmatprep.subr.mxu0 0.0
    %867 = vmatpush1.msra.mxu0 0.0
    %868 = vmatprep.subr.mxu0 0.0
    %869 = vmatpush1.msra.mxu0 0.0
    %870 = vmatprep.subr.mxu0 0.0
    %871 = vmatpush1.msra.mxu0 0.0
    %872 = vmatprep.subr.mxu0 0.0
    %873 = vmatpush1.msra.mxu0 0.0
    %874 = vmatprep.mubr.f32.mxu0 0.0
    %875 = vmatmul.mubr.f32.gmra.mrb[0].mxu0 %v808
    %v876 = vpop.f32.mrb[0].mxu0
    %v877 = vadd.f32 0.0, %v876
    %v878 = vpop.f32.mrb[0].mxu0
    %879 = vdwg.mxu0
    %v880 = vadd.f32 %v804, %v877
    %v881 = vxor.u32 %v880, 2147483648
    %v882 = vmul.f32 %v881, 1.442695
    %v883 = vpow.pop %v882
    %v884 = vadd.f32 %v883, 1.0
    %v885 = vrcp.pop %v884
    %v886 = vmul.f32 1.0, %v885
    %v887 = vtanh.pop %v880
    %v888 = vmul.f32 %v886, %v793
    %890 = vrot.lane.b32.xlu0 %v887, 64
    %v891 = vpop.permute.xlu0 %890
    %v893 = vmul.f32 %v886, %v891
    %895 = vrot.lane.b32.xlu0 %v893, 32
    %v896 = vpop.permute.xlu0 %895
    %v898 = vadd.f32 %v888, %v896
    %v899 = vtanh.pop %v898
    %901 = vrot.lane.b32.xlu0 %v899, 64
    %v902 = vpop.permute.xlu0 %901
    %v904 = vmul.f32 %v886, %v902
    %v905 = vrot.slane %v275, 7
    %906 = vrot.lane.b32.xlu0 %v905, 32
    %v907 = vpop.permute.xlu0 %906
    %v909 = vrot.slane %v379, 6
    %910 = vrot.lane.b32.xlu0 %v909, 32
    %v911 = vpop.permute.xlu0 %910
    %v913 = vrot.slane %v484, 5
    %914 = vrot.lane.b32.xlu0 %v913, 32
    %v915 = vpop.permute.xlu0 %914
    %v917 = vrot.slane %v589, 4
    %918 = vrot.lane.b32.xlu0 %v917, 32
    %v919 = vpop.permute.xlu0 %918
    %v921 = vrot.slane %v694, 3
    %922 = vrot.lane.b32.xlu0 %v921, 32
    %v923 = vpop.permute.xlu0 %922
    %v925 = vrot.slane %v799, 2
    %926 = vrot.lane.b32.xlu0 %v925, 32
    %v927 = vpop.permute.xlu0 %926
    %v930 = vrot.slane %v904, 1
    %931 = vrot.lane.b32.xlu0 %v930, 32
    %v932 = vpop.permute.xlu0 %931
    %v935 = vrot.slane %v379, 7
    %936 = vrot.lane.b32.xlu0 %v935, 32
    %v937 = vpop.permute.xlu0 %936
    %v939 = vrot.slane %v484, 6
    %940 = vrot.lane.b32.xlu0 %v939, 32
    %v941 = vpop.permute.xlu0 %940
    %v943 = vrot.slane %v589, 5
    %944 = vrot.lane.b32.xlu0 %v943, 32
    %v945 = vpop.permute.xlu0 %944
    %v947 = vrot.slane %v694, 4
    %948 = vrot.lane.b32.xlu0 %v947, 32
    %v949 = vpop.permute.xlu0 %948
    %v951 = vrot.slane %v799, 3
    %952 = vrot.lane.b32.xlu0 %v951, 32
    %v953 = vpop.permute.xlu0 %952
    %v955 = vrot.slane %v904, 2
    %956 = vrot.lane.b32.xlu0 %v955, 32
    %v957 = vpop.permute.xlu0 %956
    %v959 = vsel %vm90, 0.0, %v907
    %vm960 = vcmask 1041408
    %v961 = vsel %vm960, %v959, %v911
    %vm962 = vcmask 1042432
    %v963 = vsel %vm962, %v961, %v915
    %vm964 = vcmask 1043456
    %v965 = vsel %vm964, %v963, %v919
    %vm966 = vcmask 1044480
    %v967 = vsel %vm966, %v965, %v923
    %vm968 = vcmask 1045504
    %v969 = vsel %vm968, %v967, %v927
    %vm970 = vcmask 1046528
    %v971 = vsel %vm970, %v969, %v932
    %v972 = vsel %vm90, 0.0, %v282
    %v973 = vsel %vm960, %v972, %v937
    %v974 = vsel %vm962, %v973, %v941
    %v975 = vsel %vm964, %v974, %v945
    %v976 = vsel %vm966, %v975, %v949
    %v977 = vsel %vm968, %v976, %v953
    %v978 = vsel %vm970, %v977, %v957
    %v979 = vld [vmem:[#allocation7] sm:$0xff]
    %v980 = vld [vmem:[#allocation7 + $0x8] sm:$0xff]
    %v981 = vld [vmem:[#allocation7 + $0x10] sm:$0xff]
    %v982 = vld [vmem:[#allocation7 + $0x18] sm:$0xff]
    %v984 = vsel %vm177, %v971, 0
    %v987 = vsel %vm177, %v978, 0
    %989 = vmatprep.subr.mxu0 0.0
    %990 = vmatpush1.msra.mxu0 %v979
    %991 = vmatprep.subr.mxu0 0.0
    %992 = vmatpush1.msra.mxu0 %v980
    %993 = vmatprep.subr.mxu0 0.0
    %994 = vmatpush1.msra.mxu0 %v981
    %995 = vmatprep.subr.mxu0 0.0
    %996 = vmatpush1.msra.mxu0 %v982
    %997 = vmatprep.subr.mxu0 0.0
    %998 = vmatpush1.msra.mxu0 0.0
    %999 = vmatprep.subr.mxu0 0.0
    %1000 = vmatpush1.msra.mxu0 0.0
    %1001 = vmatprep.subr.mxu0 0.0
    %1002 = vmatpush1.msra.mxu0 0.0
    %1003 = vmatprep.subr.mxu0 0.0
    %1004 = vmatpush1.msra.mxu0 0.0
    %1005 = vmatprep.subr.mxu0 0.0
    %1006 = vmatpush1.msra.mxu0 0.0
    %1007 = vmatprep.subr.mxu0 0.0
    %1008 = vmatpush1.msra.mxu0 0.0
    %1009 = vmatprep.subr.mxu0 0.0
    %1010 = vmatpush1.msra.mxu0 0.0
    %1011 = vmatprep.subr.mxu0 0.0
    %1012 = vmatpush1.msra.mxu0 0.0
    %1013 = vmatprep.subr.mxu0 0.0
    %1014 = vmatpush1.msra.mxu0 0.0
    %1015 = vmatprep.subr.mxu0 0.0
    %1016 = vmatpush1.msra.mxu0 0.0
    %1017 = vmatprep.subr.mxu0 0.0
    %1018 = vmatpush1.msra.mxu0 0.0
    %1019 = vmatprep.subr.mxu0 0.0
    %1020 = vmatpush1.msra.mxu0 0.0
    %1021 = vmatprep.subr.mxu0 0.0
    %1022 = vmatpush1.msra.mxu0 0.0
    %1023 = vmatprep.subr.mxu0 0.0
    %1024 = vmatpush1.msra.mxu0 0.0
    %1025 = vmatprep.subr.mxu0 0.0
    %1026 = vmatpush1.msra.mxu0 0.0
    %1027 = vmatprep.subr.mxu0 0.0
    %1028 = vmatpush1.msra.mxu0 0.0
    %1029 = vmatprep.subr.mxu0 0.0
    %1030 = vmatpush1.msra.mxu0 0.0
    %1031 = vmatprep.subr.mxu0 0.0
    %1032 = vmatpush1.msra.mxu0 0.0
    %1033 = vmatprep.subr.mxu0 0.0
    %1034 = vmatpush1.msra.mxu0 0.0
    %1035 = vmatprep.subr.mxu0 0.0
    %1036 = vmatpush1.msra.mxu0 0.0
    %1037 = vmatprep.subr.mxu0 0.0
    %1038 = vmatpush1.msra.mxu0 0.0
    %1039 = vmatprep.subr.mxu0 0.0
    %1040 = vmatpush1.msra.mxu0 0.0
    %1041 = vmatprep.subr.mxu0 0.0
    %1042 = vmatpush1.msra.mxu0 0.0
    %1043 = vmatprep.subr.mxu0 0.0
    %1044 = vmatpush1.msra.mxu0 0.0
    %1045 = vmatprep.subr.mxu0 0.0
    %1046 = vmatpush1.msra.mxu0 0.0
    %1047 = vmatprep.subr.mxu0 0.0
    %1048 = vmatpush1.msra.mxu0 0.0
    %1049 = vmatprep.subr.mxu0 0.0
    %1050 = vmatpush1.msra.mxu0 0.0
    %1051 = vmatprep.subr.mxu0 0.0
    %1052 = vmatpush1.msra.mxu0 0.0
    %1053 = vmatprep.mubr.f32.mxu0 0.0
    %1054 = vmatmul.mubr.f32.gmra.mrb[0].mxu0 %v984
    %v1055 = vpop.f32.mrb[0].mxu0
    %v1056 = vadd.f32 0.0, %v1055
    %v1057 = vpop.f32.mrb[0].mxu0
    %1058 = vmatprep.mubr.f32.mxu0 0.0
    %1059 = vmatmul.mubr.f32.gmra.mrb[0].mxu0 %v987
    %v1060 = vpop.f32.mrb[0].mxu0
    %v1061 = vadd.f32 0.0, %v1060
    %v1062 = vpop.f32.mrb[0].mxu0
    %1063 = vdwg.mxu0
    %v1064 = vtanh.pop %v1056
    %v1065 = vtanh.pop %v1061
    %v1066 = vld [vmem:[%s4] sm:$0xff]
    %v1067 = vld [vmem:[%s4 + $0x8] sm:$0xff]
    %v1068 = vld [vmem:[%s4 + $0x10] sm:$0xff]
    %v1069 = vld [vmem:[%s4 + $0x18] sm:$0xff]
    %v1070 = vld [vmem:[%s5] sm:$0x1]
    %v1072 = vlaneseq
    %v1073 = vshrl.u32 %v1072, 7
    %v1074 = vsub.s32 0, %v1073
    %v1075 = vrot.slane %v1070, %v1074
    %v1078 = vsel %vm177, %v1064, 0
    %v1081 = vsel %vm177, %v1065, 0
    %1083 = vmatprep.subr.mxu0 0.0
    %1084 = vmatpush1.msra.mxu0 %v1066
    %1085 = vmatprep.subr.mxu0 0.0
    %1086 = vmatpush1.msra.mxu0 %v1067
    %1087 = vmatprep.subr.mxu0 0.0
    %1088 = vmatpush1.msra.mxu0 %v1068
    %1089 = vmatprep.subr.mxu0 0.0
    %1090 = vmatpush1.msra.mxu0 %v1069
    %1091 = vmatprep.subr.mxu0 0.0
    %1092 = vmatpush1.msra.mxu0 0.0
    %1093 = vmatprep.subr.mxu0 0.0
    %1094 = vmatpush1.msra.mxu0 0.0
    %1095 = vmatprep.subr.mxu0 0.0
    %1096 = vmatpush1.msra.mxu0 0.0
    %1097 = vmatprep.subr.mxu0 0.0
    %1098 = vmatpush1.msra.mxu0 0.0
    %1099 = vmatprep.subr.mxu0 0.0
    %1100 = vmatpush1.msra.mxu0 0.0
    %1101 = vmatprep.subr.mxu0 0.0
    %1102 = vmatpush1.msra.mxu0 0.0
    %1103 = vmatprep.subr.mxu0 0.0
    %1104 = vmatpush1.msra.mxu0 0.0
    %1105 = vmatprep.subr.mxu0 0.0
    %1106 = vmatpush1.msra.mxu0 0.0
    %1107 = vmatprep.subr.mxu0 0.0
    %1108 = vmatpush1.msra.mxu0 0.0
    %1109 = vmatprep.subr.mxu0 0.0
    %1110 = vmatpush1.msra.mxu0 0.0
    %1111 = vmatprep.subr.mxu0 0.0
    %1112 = vmatpush1.msra.mxu0 0.0
    %1113 = vmatprep.subr.mxu0 0.0
    %1114 = vmatpush1.msra.mxu0 0.0
    %1115 = vmatprep.subr.mxu0 0.0
    %1116 = vmatpush1.msra.mxu0 0.0
    %1117 = vmatprep.subr.mxu0 0.0
    %1118 = vmatpush1.msra.mxu0 0.0
    %1119 = vmatprep.subr.mxu0 0.0
    %1120 = vmatpush1.msra.mxu0 0.0
    %1121 = vmatprep.subr.mxu0 0.0
    %1122 = vmatpush1.msra.mxu0 0.0
    %1123 = vmatprep.subr.mxu0 0.0
    %1124 = vmatpush1.msra.mxu0 0.0
    %1125 = vmatprep.subr.mxu0 0.0
    %1126 = vmatpush1.msra.mxu0 0.0
    %1127 = vmatprep.subr.mxu0 0.0
    %1128 = vmatpush1.msra.mxu0 0.0
    %1129 = vmatprep.subr.mxu0 0.0
    %1130 = vmatpush1.msra.mxu0 0.0
    %1131 = vmatprep.subr.mxu0 0.0
    %1132 = vmatpush1.msra.mxu0 0.0
    %1133 = vmatprep.subr.mxu0 0.0
    %1134 = vmatpush1.msra.mxu0 0.0
    %1135 = vmatprep.subr.mxu0 0.0
    %1136 = vmatpush1.msra.mxu0 0.0
    %1137 = vmatprep.subr.mxu0 0.0
    %1138 = vmatpush1.msra.mxu0 0.0
    %1139 = vmatprep.subr.mxu0 0.0
    %1140 = vmatpush1.msra.mxu0 0.0
    %1141 = vmatprep.subr.mxu0 0.0
    %1142 = vmatpush1.msra.mxu0 0.0
    %1143 = vmatprep.subr.mxu0 0.0
    %1144 = vmatpush1.msra.mxu0 0.0
    %1145 = vmatprep.subr.mxu0 0.0
    %1146 = vmatpush1.msra.mxu0 0.0
    %1147 = vmatprep.mubr.f32.mxu0 0.0
    %1148 = vmatmul.mubr.f32.gmra.mrb[0].mxu0 %v1078
    %v1149 = vpop.f32.mrb[0].mxu0
    %v1150 = vadd.f32 %v1075, %v1149
    %v1151 = vpop.f32.mrb[0].mxu0
    %1152 = vmatprep.mubr.f32.mxu0 0.0
    %1153 = vmatmul.mubr.f32.gmra.mrb[0].mxu0 %v1081
    %v1154 = vpop.f32.mrb[0].mxu0
    %v1155 = vadd.f32 %v1075, %v1154
    %v1156 = vpop.f32.mrb[0].mxu0
    %1157 = vdwg.mxu0
    %1158 = vst.msk [vmem:[#allocation8] sm:$0xff] %vm177, %v1150
    %1159 = vst.msk [vmem:[#allocation8 + $0x8] sm:$0xff] %vm177, %v1155
    // Predicated region
    $region38: #{tpu_custom_call.1} parent=1 // pred_check
      _
    $region39: #{tpu_custom_call.1} parent=1 // pred_check_branch
      %1161 = sbr.rel (0) target = $region41
    $region40: #{tpu_custom_call.1} parent=1 // pred_region
      %s1163 = ssub.s32 256, 256
      %1164 = vsyncadd [#allocation4], %s1163
      %s1165 = sshll.u32 [#allocation8], 4
      %s1166 = int_to_ptr.vmem [resolvable:$true] %s1165
      %1171 = dma.vmem_to_hbm [thread:$0]  %s1166, 256, %s6, [#allocation4], 128, 128, 8
    $region41: #{tpu_custom_call.1} parent=1 // pred_fallthru
      _
    // Predicated region
    $region42: #{tpu_custom_call.1} parent=1 // pred_check
      _
    $region43: #{tpu_custom_call.1} parent=1 // pred_check_branch
      %1173 = sbr.rel (0) target = $region45
    $region44: #{tpu_custom_call.1} parent=1 // pred_region
      %1174 = dma.done [#allocation4], 256
    $region45: #{tpu_custom_call.1} parent=1 // pred_fallthru
      _
    %1175 = vsyncpa [#allocation3], 1
    %1176 = vsyncpa [#allocation6], 1
    %1177 = vsyncpa [#allocation4], 1

</llo_original>
